<compile_context>
chip_gen: v7x
topology: tpu7x:2x2x1
jax: 0.10.0
libtpu: 0.0.40
codegen_flags: <defaults>
</compile_context>

<pallas_src>
import jax
import jax.numpy as jnp
from jax.experimental import pallas as pl
from jax.experimental.pallas import tpu as pltpu

# ImageNet normalization constants (registered buffers in the PyTorch module).
_IMAGENET_MEAN = (0.485, 0.456, 0.406)
_IMAGENET_STD = (0.229, 0.224, 0.225)

# Candidate lane widths for the lane-dense reshape (largest first).
_LANE_CANDIDATES = (4096, 2048, 1024, 512, 256, 128)
# Per-tile byte cap.  in + out, double buffered => 4x this in VMEM (<=16 MiB).
_BLOCK_BYTES_CAP = 4 * 1024 * 1024


def _normalize_kernel(scale_ref, shift_ref, x_ref, o_ref):
    """o[c] = x[c] * scale[c] + shift[c], with the channel axis inside the block.

    scale_ref / shift_ref : (C,) f32 in SMEM (scalar reads).
    x_ref / o_ref         : (C, TH, L) tiles in VMEM (batch axis squeezed).
    """
    num_channels = x_ref.shape[0]
    for c in range(num_channels):            # static unroll, C == 3
        o_ref[c] = (x_ref[c] * scale_ref[c] + shift_ref[c]).astype(o_ref.dtype)


def normalize_imagenet(x, mean, std):
    """(x - mean) / std with per-channel mean/std, as one fused pallas_call.

    x: (B, C, H, W).  mean/std: (C,).
    """
    B, C, H, W = x.shape

    # Fold the divide into FMA coefficients once on the host side.
    scale = (1.0 / std).astype(jnp.float32)      # (C,)
    shift = (-mean / std).astype(jnp.float32)    # (C,)

    # ---- lane-dense layout --------------------------------------------------
    # Reshape each contiguous (H, W) channel image to (rows, L) with L a large
    # multiple of 128 dividing H*W, so stores are unmasked even when W % 128 != 0.
    N = H * W
    L = None
    for cand in _LANE_CANDIDATES:
        if N % cand == 0:
            L = cand
            break
    if L is not None:
        rows = N // L
        x2 = x.reshape(B, C, rows, L)            # row-major reshape: layout no-op
    else:
        # H*W not a multiple of 128: keep (H, W); trailing-lane stores are masked.
        rows, L = H, W
        x2 = x

    # ---- block size: whole (C, rows, L) slab per batch element if it fits ---
    itemsize = x2.dtype.itemsize
    sub = 16 if itemsize == 2 else 8             # sublane multiple (bf16 packs x2)
    full_block_bytes = C * rows * L * itemsize
    if full_block_bytes <= _BLOCK_BYTES_CAP:
        th = rows                                # full slab -> grid (B, 1)
    else:
        th = max(sub, (_BLOCK_BYTES_CAP // (C * L * itemsize)) // sub * sub)
    grid = (B, pl.cdiv(rows, th))

    block = (pl.Squeezed(), C, th, L)            # kernel sees (C, th, L)
    idx_map = lambda b, h: (b, 0, h, 0)

    flops = 2 * B * C * H * W                    # one mul + one add per element
    bytes_accessed = 2 * B * C * H * W * itemsize + 2 * C * 4

    out = pl.pallas_call(
        _normalize_kernel,
        out_shape=jax.ShapeDtypeStruct(x2.shape, x2.dtype),
        grid=grid,
        in_specs=[
            pl.BlockSpec(memory_space=pltpu.MemorySpace.SMEM),   # scale (C,)
            pl.BlockSpec(memory_space=pltpu.MemorySpace.SMEM),   # shift (C,)
            pl.BlockSpec(block, idx_map),
        ],
        out_specs=pl.BlockSpec(block, idx_map),
        compiler_params=pltpu.CompilerParams(
            dimension_semantics=("parallel", "parallel"),
            vmem_limit_bytes=32 * 1024 * 1024,   # headroom over v5e's 16 MiB default
        ),
        cost_estimate=pl.CostEstimate(
            flops=flops, transcendentals=0, bytes_accessed=bytes_accessed),
    )(scale, shift, x2)

    if out.shape != (B, C, H, W):
        out = out.reshape(B, C, H, W)
    return out


def hrn_encoder_forward(x, mean, std):
    """Matches HRNEncoder.forward for the default config (append_layers=None).

    1) per-channel ImageNet normalization  (fused Pallas kernel above)
    2) HRNet backbone -> features['concat']  (external pretrained network)
    3) last_op only if append_layers is set (it is None here -> skipped)
    """
    x = normalize_imagenet(x, mean, std)
    # TODO(synk): the HRNet backbone (hrnet.load_HRNet(pretrained=True) ->
    # features['concat'], feature_dim=2048) is an external pretrained CNN and
    # is not reimplementable self-contained; it is left untranslated.  Best
    # deployment option: fold (1/std, -mean/std) into its first conv's weights
    # and bias offline and drop the normalization pass entirely.
    features = x
    return features


if __name__ == "__main__":
    # Small shapes consistent with the module: 3-channel RGB image input with a
    # width (112) that is NOT a multiple of 128, exercising the lane-dense
    # reshape path (H*W = 1792 -> rows=7, L=256).
    B, C, H, W = 2, 3, 16, 112

    key = jax.random.PRNGKey(0)
    x = jax.random.normal(key, (B, C, H, W), jnp.float32)

    mean = jnp.asarray(_IMAGENET_MEAN, jnp.float32)
    std = jnp.asarray(_IMAGENET_STD, jnp.float32)

    out = hrn_encoder_forward(x, mean, std)
    jax.block_until_ready(out)

    # Pure-JAX reference of the module's own math: (x - MEAN) / STD.
    ref = (x - mean[None, :, None, None]) / std[None, :, None, None]
    assert out.shape == (B, C, H, W)
    assert jnp.allclose(out, ref, atol=1e-5, rtol=1e-5)

    print("KERNEL_OK")
</pallas_src>

<mosaic_0001>
module attributes {stable_mosaic.version = 11 : i64} {
  func.func @_normalize_kernel(%arg0: i32, %arg1: i32, %arg2: memref<3xf32, #tpu.memory_space<smem>>, %arg3: memref<3xf32, #tpu.memory_space<smem>>, %arg4: memref<1x3x7x256xf32, #tpu.memory_space<vmem>>, %arg5: memref<1x3x7x256xf32, #tpu.memory_space<vmem>>) attributes {dimension_semantics = [#tpu.dimension_semantics<parallel>, #tpu.dimension_semantics<parallel>], iteration_bounds = array<i64: 2, 1>, scalar_prefetch = 0 : i64, scratch_operands = 0 : i64, tpu.core_type = #tpu.core_type<tc>, window_params = [{transform_indices = @transform_0, window_bounds = array<i64: 3>}, {transform_indices = @transform_1, window_bounds = array<i64: 3>}, {transform_indices = @transform_2, window_bounds = array<i64: 1, 3, 7, 256>}, {transform_indices = @transform_3, window_bounds = array<i64: 1, 3, 7, 256>}]} {
    %c0 = arith.constant 0 : index
    %c0_0 = arith.constant 0 : index
    %c0_1 = arith.constant 0 : index
    %c0_2 = arith.constant 0 : index
    %0 = vector.load %arg4[%c0, %c0_0, %c0_1, %c0_2] : memref<1x3x7x256xf32, #tpu.memory_space<vmem>>, vector<1x1x7x256xf32>
    %1 = vector.shape_cast %0 : vector<1x1x7x256xf32> to vector<7x256xf32>
    %c0_3 = arith.constant 0 : index
    %2 = memref.load %arg2[%c0_3] : memref<3xf32, #tpu.memory_space<smem>>
    %3 = vector.broadcast %2 : f32 to vector<7x256xf32>
    %4 = arith.mulf %1, %3 : vector<7x256xf32>
    %c0_4 = arith.constant 0 : index
    %5 = memref.load %arg3[%c0_4] : memref<3xf32, #tpu.memory_space<smem>>
    %6 = vector.broadcast %5 : f32 to vector<7x256xf32>
    %7 = arith.addf %4, %6 : vector<7x256xf32>
    %c0_5 = arith.constant 0 : index
    %c0_6 = arith.constant 0 : index
    %c0_7 = arith.constant 0 : index
    %c0_8 = arith.constant 0 : index
    %8 = vector.load %arg5[%c0_5, %c0_6, %c0_7, %c0_8] : memref<1x3x7x256xf32, #tpu.memory_space<vmem>>, vector<1x1x7x256xf32>
    %9 = vector.shape_cast %8 : vector<1x1x7x256xf32> to vector<7x256xf32>
    %10 = vector.shape_cast %7 : vector<7x256xf32> to vector<1x1x7x256xf32>
    tpu.vector_store %arg5[%c0_5, %c0_6, %c0_7, %c0_8], %10 {strides = array<i32>} : memref<1x3x7x256xf32, #tpu.memory_space<vmem>>, vector<1x1x7x256xf32>,
    %c0_9 = arith.constant 0 : index
    %c1 = arith.constant 1 : index
    %c0_10 = arith.constant 0 : index
    %c0_11 = arith.constant 0 : index
    %11 = vector.load %arg4[%c0_9, %c1, %c0_10, %c0_11] : memref<1x3x7x256xf32, #tpu.memory_space<vmem>>, vector<1x1x7x256xf32>
    %12 = vector.shape_cast %11 : vector<1x1x7x256xf32> to vector<7x256xf32>
    %c1_12 = arith.constant 1 : index
    %13 = memref.load %arg2[%c1_12] : memref<3xf32, #tpu.memory_space<smem>>
    %14 = vector.broadcast %13 : f32 to vector<7x256xf32>
    %15 = arith.mulf %12, %14 : vector<7x256xf32>
    %c1_13 = arith.constant 1 : index
    %16 = memref.load %arg3[%c1_13] : memref<3xf32, #tpu.memory_space<smem>>
    %17 = vector.broadcast %16 : f32 to vector<7x256xf32>
    %18 = arith.addf %15, %17 : vector<7x256xf32>
    %c0_14 = arith.constant 0 : index
    %c1_15 = arith.constant 1 : index
    %c0_16 = arith.constant 0 : index
    %c0_17 = arith.constant 0 : index
    %19 = vector.load %arg5[%c0_14, %c1_15, %c0_16, %c0_17] : memref<1x3x7x256xf32, #tpu.memory_space<vmem>>, vector<1x1x7x256xf32>
    %20 = vector.shape_cast %19 : vector<1x1x7x256xf32> to vector<7x256xf32>
    %21 = vector.shape_cast %18 : vector<7x256xf32> to vector<1x1x7x256xf32>
    tpu.vector_store %arg5[%c0_14, %c1_15, %c0_16, %c0_17], %21 {strides = array<i32>} : memref<1x3x7x256xf32, #tpu.memory_space<vmem>>, vector<1x1x7x256xf32>,
    %c0_18 = arith.constant 0 : index
    %c2 = arith.constant 2 : index
    %c0_19 = arith.constant 0 : index
    %c0_20 = arith.constant 0 : index
    %22 = vector.load %arg4[%c0_18, %c2, %c0_19, %c0_20] : memref<1x3x7x256xf32, #tpu.memory_space<vmem>>, vector<1x1x7x256xf32>
    %23 = vector.shape_cast %22 : vector<1x1x7x256xf32> to vector<7x256xf32>
    %c2_21 = arith.constant 2 : index
    %24 = memref.load %arg2[%c2_21] : memref<3xf32, #tpu.memory_space<smem>>
    %25 = vector.broadcast %24 : f32 to vector<7x256xf32>
    %26 = arith.mulf %23, %25 : vector<7x256xf32>
    %c2_22 = arith.constant 2 : index
    %27 = memref.load %arg3[%c2_22] : memref<3xf32, #tpu.memory_space<smem>>
    %28 = vector.broadcast %27 : f32 to vector<7x256xf32>
    %29 = arith.addf %26, %28 : vector<7x256xf32>
    %c0_23 = arith.constant 0 : index
    %c2_24 = arith.constant 2 : index
    %c0_25 = arith.constant 0 : index
    %c0_26 = arith.constant 0 : index
    %30 = vector.load %arg5[%c0_23, %c2_24, %c0_25, %c0_26] : memref<1x3x7x256xf32, #tpu.memory_space<vmem>>, vector<1x1x7x256xf32>
    %31 = vector.shape_cast %30 : vector<1x1x7x256xf32> to vector<7x256xf32>
    %32 = vector.shape_cast %29 : vector<7x256xf32> to vector<1x1x7x256xf32>
    tpu.vector_store %arg5[%c0_23, %c2_24, %c0_25, %c0_26], %32 {strides = array<i32>} : memref<1x3x7x256xf32, #tpu.memory_space<vmem>>, vector<1x1x7x256xf32>,
    return
  }
  func.func @transform_0(%arg0: i32, %arg1: i32) -> i32 {
    %c0_i32 = arith.constant 0 : i32
    %c0_i32_0 = arith.constant 0 : i32
    return %c0_i32 : i32
  }
  func.func @transform_1(%arg0: i32, %arg1: i32) -> i32 {
    %c0_i32 = arith.constant 0 : i32
    %c0_i32_0 = arith.constant 0 : i32
    return %c0_i32 : i32
  }
  func.func @transform_2(%arg0: i32, %arg1: i32) -> (i32, i32, i32, i32) {
    %c0_i32 = arith.constant 0 : i32
    %c0_i32_0 = arith.constant 0 : i32
    %c0_i32_1 = arith.constant 0 : i32
    return %arg0, %c0_i32, %arg1, %c0_i32_0 : i32, i32, i32, i32
  }
  func.func @transform_3(%arg0: i32, %arg1: i32) -> (i32, i32, i32, i32) {
    %c0_i32 = arith.constant 0 : i32
    %c0_i32_0 = arith.constant 0 : i32
    %c0_i32_1 = arith.constant 0 : i32
    return %arg0, %c0_i32, %arg1, %c0_i32_0 : i32, i32, i32, i32
  }
}

</mosaic_0001>

<llo_original>
// kernel: tpu_custom_call.1
$region0: #{tpu_custom_call.1}
  #allocation0 [shape = 'u32[]', space=smem, size = 0x4, offset = 0x4, fixed_abs, tag = 'smem constant byte address 0x4 - core index']
  #allocation1 [shape = 'u32[144,128]{1,0:T(1,128)}', space=vmem, size = 0x12000, scoped, tag = 'internal scratch']
  %s0 = inlined_call_operand.vmem [shape: f32[3], index: 0, kind: input, shape index: {}]
  %s1 = inlined_call_operand.vmem [shape: f32[3], index: 1, kind: input, shape index: {}]
  %s2 = inlined_call_operand.vmem [shape: f32[2,3,7,256], index: 2, kind: input, shape index: {}]
  %s3 = inlined_call_operand.vmem [shape: f32[2,3,7,256], index: 3, kind: output, shape index: {}]
  %s4 = sld [smem:[#allocation0]]
  $region53: #{tpu_custom_call.1} parent=0
    _
  %s6 = ssub.s32 1, %s4
  %s7 = scalar_select 0, %s6, %s4
  $region1: #{tpu_custom_call.1} parent=0
    #allocation2 [shape = 'u8[512]{0}', space=smem, size = 0x200, scoped, tag = 'input window, operand 0, single buffered']
    #allocation3 [shape = 's32[2]{0}', space=sflag, size = 0x8, scoped, tag = 'scoped memory for tpu_custom_call.1']
    #allocation4 [shape = 'u8[512]{0}', space=smem, size = 0x200, scoped, tag = 'input window, operand 1, single buffered']
    #allocation5 [shape = 's32[1]{0}', space=sflag, size = 0x4, scoped, tag = 'scoped memory for tpu_custom_call.1']
    %8 = vsyncpa [#allocation3], 0
    %9 = vsyncpa [#allocation5], 0
    loop: start=0, step=1, limit=4
    $region2: #{tpu_custom_call.1} parent=1 // loop_pre_header
      _
    $region3: #{tpu_custom_call.1} parent=1 // loop_header
      %s11 = sphi 0, %s15
      %p12 = scmp.ge.s32.totalorder %s11, 4
      %s18 = sphi 0, %s30
      %s19 = sphi 0, %s26
      %s20 = sphi 0, %s18
      %s21 = sphi 0, %s19
      %s22 = sphi 0, %s20
      %s23 = sphi 0, %s21
      %s31 = sphi 0, %s31
      %s33 = sphi 0, %s31
      %s34 = sphi 0, %s33
      %s48 = sphi 0, %s34
      %s52 = sphi 0, %s52
      %s54 = sphi 0, %s52
      %s55 = sphi 0, %s54
      %s69 = sphi 0, %s55
      %s77 = sphi 0, %s79
      %s80 = sphi 0, %s77
      %s81 = sphi 0, %s80
      %s97 = sphi 0, %s81
      %s105 = sphi 0, %s107
      %s108 = sphi 0, %s105
      %s109 = sphi 0, %s108
      %s125 = sphi 0, %s109
    $region4: #{tpu_custom_call.1} parent=1 // loop_header_branch
      %14 = sbr.rel (%p12) target = $region8
    $region5: #{tpu_custom_call.1} parent=1 // loop_body
      %s16 = ssub.s32 %s11, 1
      %s17 = ssub.s32 %s11, 2
      %s24 = sadd.s32 1, %s19
      %p25 = scmp.ge.s32.totalorder %s24, 1
      %s26 = scalar_select %p25, 0, %s24
      %s27 = sadd.s32 1, %s18
      %s28 = scalar_select %p25, %s27, %s18
      %p29 = scmp.ge.s32.totalorder %s28, 2
      %s30 = scalar_select %p29, 0, %s28
      %s32 = sadd.s32 %s31, 1
      %p35 = scmp.eq.s32.totalorder %s11, 1
      %p36 = scmp.ne.s32.totalorder %s31, %s33
      %p37 = scmp.eq.s32.totalorder %s11, 0
      %p38 = por %p36, %p37
      %p39 = scmp.ne.s32.totalorder %s31, %s33
      %p40 = scmp.eq.s32.totalorder %s16, 1
      %p41 = por %p39, %p40
      %p42 = scmp.ne.s32.totalorder %s33, %s34
      %p43 = scmp.eq.s32.totalorder %s16, 0
      %p44 = por %p42, %p43
      %p45 = scmp.ne.s32.totalorder %s33, %s34
      %p46 = scmp.eq.s32.totalorder %s17, 1
      %p47 = por %p45, %p46
      %p49 = scmp.ne.s32.totalorder %s34, %s48
      %p50 = scmp.eq.s32.totalorder %s17, 0
      %p51 = por %p49, %p50
      %s53 = sadd.s32 %s52, 1
      %p56 = scmp.eq.s32.totalorder %s11, 1
      %p57 = scmp.ne.s32.totalorder %s52, %s54
      %p58 = scmp.eq.s32.totalorder %s11, 0
      %p59 = por %p57, %p58
      %p60 = scmp.ne.s32.totalorder %s52, %s54
      %p61 = scmp.eq.s32.totalorder %s16, 1
      %p62 = por %p60, %p61
      %p63 = scmp.ne.s32.totalorder %s54, %s55
      %p64 = scmp.eq.s32.totalorder %s16, 0
      %p65 = por %p63, %p64
      %p66 = scmp.ne.s32.totalorder %s54, %s55
      %p67 = scmp.eq.s32.totalorder %s17, 1
      %p68 = por %p66, %p67
      %p70 = scmp.ne.s32.totalorder %s55, %s69
      %p71 = scmp.eq.s32.totalorder %s17, 0
      %p72 = por %p70, %p71
      %s73 = ssub.s32 %s18, %s30
      %s74 = ssub.s32 %s19, %s26
      %s75 = sor.u32 %s73, %s74
      %p76 = scmp.eq.s32.totalorder %s75, 0
      %s78 = sadd.s32 %s77, 1
      %s79 = scalar_select %p76, %s77, %s78
      %p82 = pneg %p76
      %p83 = scmp.eq.s32.totalorder %s11, 1
      %p84 = por %p82, %p83
      %p85 = scmp.ne.s32.totalorder %s77, %s80
      %p86 = scmp.eq.s32.totalorder %s11, 0
      %p87 = por %p85, %p86
      %p88 = scmp.ne.s32.totalorder %s77, %s80
      %p89 = scmp.eq.s32.totalorder %s16, 1
      %p90 = por %p88, %p89
      %p91 = scmp.ne.s32.totalorder %s80, %s81
      %p92 = scmp.eq.s32.totalorder %s16, 0
      %p93 = por %p91, %p92
      %p94 = scmp.ne.s32.totalorder %s80, %s81
      %p95 = scmp.eq.s32.totalorder %s17, 1
      %p96 = por %p94, %p95
      %p98 = scmp.ne.s32.totalorder %s81, %s97
      %p99 = scmp.eq.s32.totalorder %s17, 0
      %p100 = por %p98, %p99
      %s101 = ssub.s32 %s18, %s30
      %s102 = ssub.s32 %s19, %s26
      %s103 = sor.u32 %s101, %s102
      %p104 = scmp.eq.s32.totalorder %s103, 0
      %s106 = sadd.s32 %s105, 1
      %s107 = scalar_select %p104, %s105, %s106
      %p110 = pneg %p104
      %p111 = scmp.eq.s32.totalorder %s11, 1
      %p112 = por %p110, %p111
      %p113 = scmp.ne.s32.totalorder %s105, %s108
      %p114 = scmp.eq.s32.totalorder %s11, 0
      %p115 = por %p113, %p114
      %p116 = scmp.ne.s32.totalorder %s105, %s108
      %p117 = scmp.eq.s32.totalorder %s16, 1
      %p118 = por %p116, %p117
      %p119 = scmp.ne.s32.totalorder %s108, %s109
      %p120 = scmp.eq.s32.totalorder %s16, 0
      %p121 = por %p119, %p120
      %p122 = scmp.ne.s32.totalorder %s108, %s109
      %p123 = scmp.eq.s32.totalorder %s17, 1
      %p124 = por %p122, %p123
      %p126 = scmp.ne.s32.totalorder %s109, %s125
      %p127 = scmp.eq.s32.totalorder %s17, 0
      %p128 = por %p126, %p127
      %p129 = scmp.le.s32.totalorder 1, %s11
      %p130 = scmp.lt.s32.totalorder %s11, 3
      %p131 = pnand %p129, %p130
      %p132 = pneg %p131
      // Predicated region
      $region9: #{tpu_custom_call.1} parent=5 // pred_check
        _
      $region10: #{tpu_custom_call.1} parent=5 // pred_check_branch
        %134 = sbr.rel (%p131) target = $region12
      $region11: #{tpu_custom_call.1} parent=5 // pred_region
        %s135 = ssub.s32 %s11, 1
        // Predicated region
        $region13: #{tpu_custom_call.1} parent=11 // pred_check
          %p136 = pneg %p44
        $region14: #{tpu_custom_call.1} parent=11 // pred_check_branch
          %138 = sbr.rel (%p136) target = $region16
        $region15: #{tpu_custom_call.1} parent=11 // pred_region
          %s140 = ssub.s32 16, 16
          %141 = vsyncadd [#allocation3], %s140
          %s143 = sshll.u32 %s0, 4
          %s144 = int_to_ptr.vmem [resolvable:$true] %s143
          %146 = dma.vmem_to_smem %s144, 16, [#allocation2], [#allocation3]
        $region16: #{tpu_custom_call.1} parent=11 // pred_fallthru
          _
        // Predicated region
        $region17: #{tpu_custom_call.1} parent=11 // pred_check
          %p147 = pneg %p65
        $region18: #{tpu_custom_call.1} parent=11 // pred_check_branch
          %149 = sbr.rel (%p147) target = $region20
        $region19: #{tpu_custom_call.1} parent=11 // pred_region
          %s151 = ssub.s32 16, 16
          %152 = vsyncadd [#allocation5], %s151
          %s154 = sshll.u32 %s1, 4
          %s155 = int_to_ptr.vmem [resolvable:$true] %s154
          %157 = dma.vmem_to_smem %s155, 16, [#allocation4], [#allocation5]
        $region20: #{tpu_custom_call.1} parent=11 // pred_fallthru
          _
      $region12: #{tpu_custom_call.1} parent=5 // pred_fallthru
        _
      %p158 = scmp.lt.s32.totalorder %s11, 2
      // Predicated region
      $region21: #{tpu_custom_call.1} parent=5 // pred_check
        %p159 = pneg %p158
      $region22: #{tpu_custom_call.1} parent=5 // pred_check_branch
        %161 = sbr.rel (%p159) target = $region24
      $region23: #{tpu_custom_call.1} parent=5 // pred_region
        // Predicated region
        $region25: #{tpu_custom_call.1} parent=23 // pred_check
          %p162 = pneg %p87
        $region26: #{tpu_custom_call.1} parent=23 // pred_check_branch
          %164 = sbr.rel (%p162) target = $region28
        $region27: #{tpu_custom_call.1} parent=23 // pred_region
          %p165 = scmp.lt.s32.totalorder %s18, 1
          %s166 = scalar_select %p165, %s18, 1
          %p167 = scmp.lt.s32.totalorder %s19, 0
          %s168 = scalar_select %p167, %s19, 0
          %s169 = smul.addr %s168, 2
          %s170 = smul.addr %s166, 6
          %s171 = sadd.s32 %s169, %s170
          %s172 = smul.addr %s171, 8
          %s173 = scalar_lea.vmem %s2, %s172
        $region28: #{tpu_custom_call.1} parent=23 // pred_fallthru
          _
      $region24: #{tpu_custom_call.1} parent=5 // pred_fallthru
        _
      %p174 = scmp.le.s32.totalorder 1, %s11
      %p175 = scmp.lt.s32.totalorder %s11, 3
      %p176 = pnand %p174, %p175
      %p177 = pneg %p176
      // Predicated region
      $region29: #{tpu_custom_call.1} parent=5 // pred_check
        _
      $region30: #{tpu_custom_call.1} parent=5 // pred_check_branch
        %179 = sbr.rel (%p176) target = $region32
      $region31: #{tpu_custom_call.1} parent=5 // pred_region
        %s180 = ssub.s32 %s11, 1
        // Predicated region
        $region33: #{tpu_custom_call.1} parent=31 // pred_check
          %p181 = pneg %p44
        $region34: #{tpu_custom_call.1} parent=31 // pred_check_branch
          %183 = sbr.rel (%p181) target = $region36
        $region35: #{tpu_custom_call.1} parent=31 // pred_region
          %184 = dma.done [#allocation3], 16
        $region36: #{tpu_custom_call.1} parent=31 // pred_fallthru
          _
        // Predicated region
        $region37: #{tpu_custom_call.1} parent=31 // pred_check
          %p185 = pneg %p65
        $region38: #{tpu_custom_call.1} parent=31 // pred_check_branch
          %187 = sbr.rel (%p185) target = $region40
        $region39: #{tpu_custom_call.1} parent=31 // pred_region
          %188 = dma.done [#allocation5], 16
        $region40: #{tpu_custom_call.1} parent=31 // pred_fallthru
          _
        %189 = sfence
        %p190 = pneg %p44
        %p191 = pneg %p41
        %p192 = pneg %p65
        %p193 = pneg %p62
        %p194 = scmp.lt.s32.totalorder %s20, 1
        %s195 = scalar_select %p194, %s20, 1
        %p196 = scmp.lt.s32.totalorder %s21, 0
        %s197 = scalar_select %p196, %s21, 0
        %s198 = smul.addr %s197, 2
        %s199 = smul.addr %s195, 6
        %s200 = sadd.s32 %s198, %s199
        %s201 = smul.addr %s200, 8
        %s202 = scalar_lea.vmem %s2, %s201
        %p203 = pneg %p93
        %p204 = pneg %p90
        %p205 = pneg %p121
        %p206 = pneg %p118
        %p207 = scmp.lt.s32.totalorder %s20, 1
        %s208 = scalar_select %p207, %s20, 1
        %p209 = scmp.lt.s32.totalorder %s21, 0
        %s210 = scalar_select %p209, %s21, 0
        %s211 = smul.addr %s210, 2
        %s212 = smul.addr %s208, 6
        %s213 = sadd.s32 %s211, %s212
        %s214 = smul.addr %s213, 8
        %s215 = scalar_lea.vmem %s3, %s214
        %p216 = scmp.lt.s32.totalorder %s20, 1
        %s217 = scalar_select %p216, %s20, 1
        %p218 = scmp.lt.s32.totalorder %s21, 0
        %s219 = scalar_select %p218, %s21, 0
        %s220 = smul.addr %s219, 2
        %s221 = smul.addr %s217, 6
        %s222 = sadd.s32 %s220, %s221
        %s223 = smul.addr %s222, 8
        %s224 = scalar_lea.vmem %s2, %s223
        %p225 = scmp.lt.s32.totalorder %s20, 1
        %s226 = scalar_select %p225, %s20, 1
        %p227 = scmp.lt.s32.totalorder %s21, 0
        %s228 = scalar_select %p227, %s21, 0
        %s229 = smul.addr %s228, 2
        %s230 = smul.addr %s226, 6
        %s231 = sadd.s32 %s229, %s230
        %s232 = smul.addr %s231, 8
        %s233 = scalar_lea.vmem %s3, %s232
        %v234 = vld [vmem:[%s224] sm:$0x7f]
        %v235 = vld [vmem:[%s224 + $0x8] sm:$0x7f]
        %s236 = sld [smem:[#allocation2]]
        %v237 = vstv %s236
        %v238 = vmul.f32 %v234, %v237
        %v239 = vmul.f32 %v235, %v237
        %s240 = sld [smem:[#allocation4]]
        %v241 = vstv %s240
        %v242 = vadd.f32 %v238, %v241
        %v243 = vadd.f32 %v239, %v241
        %244 = vst [vmem:[%s233] sm:$0x7f] %v242
        %245 = vst [vmem:[%s233 + $0x8] sm:$0x7f] %v243
        %s246 = scalar_lea.vmem %s224, 16
        %v247 = vld [vmem:[%s246] sm:$0x7f]
        %v248 = vld [vmem:[%s246 + $0x8] sm:$0x7f]
        %s249 = sld [smem:[#allocation2 + $0x1]]
        %v250 = vstv %s249
        %v251 = vmul.f32 %v247, %v250
        %v252 = vmul.f32 %v248, %v250
        %s253 = sld [smem:[#allocation4 + $0x1]]
        %v254 = vstv %s253
        %v255 = vadd.f32 %v251, %v254
        %v256 = vadd.f32 %v252, %v254
        %s257 = scalar_lea.vmem %s233, 16
        %258 = vst [vmem:[%s257] sm:$0x7f] %v255
        %259 = vst [vmem:[%s257 + $0x8] sm:$0x7f] %v256
        %s260 = scalar_lea.vmem %s224, 32
        %v261 = vld [vmem:[%s260] sm:$0x7f]
        %v262 = vld [vmem:[%s260 + $0x8] sm:$0x7f]
        %s263 = sld [smem:[#allocation2 + $0x2]]
        %v264 = vstv %s263
        %v265 = vmul.f32 %v261, %v264
        %v266 = vmul.f32 %v262, %v264
        %s267 = sld [smem:[#allocation4 + $0x2]]
        %v268 = vstv %s267
        %v269 = vadd.f32 %v265, %v268
        %v270 = vadd.f32 %v266, %v268
        %s271 = scalar_lea.vmem %s233, 32
        %272 = vst [vmem:[%s271] sm:$0x7f] %v269
        %273 = vst [vmem:[%s271 + $0x8] sm:$0x7f] %v270
        %p274 = scmp.lt.s32.totalorder %s20, 1
        %s275 = scalar_select %p274, %s20, 1
        %p276 = scmp.lt.s32.totalorder %s21, 0
        %s277 = scalar_select %p276, %s21, 0
        %s278 = smul.addr %s277, 2
        %s279 = smul.addr %s275, 6
        %s280 = sadd.s32 %s278, %s279
        %s281 = smul.addr %s280, 8
        %s282 = scalar_lea.vmem %s3, %s281
        // Predicated region
        $region41: #{tpu_custom_call.1} parent=31 // pred_check
          %p283 = pneg %p118
        $region42: #{tpu_custom_call.1} parent=31 // pred_check_branch
          %285 = sbr.rel (%p283) target = $region44
        $region43: #{tpu_custom_call.1} parent=31 // pred_region
          _
        $region44: #{tpu_custom_call.1} parent=31 // pred_fallthru
          _
      $region32: #{tpu_custom_call.1} parent=5 // pred_fallthru
        _
      %p286 = scmp.le.s32.totalorder 2, %s11
      // Predicated region
      $region45: #{tpu_custom_call.1} parent=5 // pred_check
        %p287 = pneg %p286
      $region46: #{tpu_custom_call.1} parent=5 // pred_check_branch
        %289 = sbr.rel (%p287) target = $region48
      $region47: #{tpu_custom_call.1} parent=5 // pred_region
        %s290 = ssub.s32 %s11, 2
        // Predicated region
        $region49: #{tpu_custom_call.1} parent=47 // pred_check
          %p291 = pneg %p124
        $region50: #{tpu_custom_call.1} parent=47 // pred_check_branch
          %293 = sbr.rel (%p291) target = $region52
        $region51: #{tpu_custom_call.1} parent=47 // pred_region
          %p294 = scmp.lt.s32.totalorder %s22, 1
          %s295 = scalar_select %p294, %s22, 1
          %p296 = scmp.lt.s32.totalorder %s23, 0
          %s297 = scalar_select %p296, %s23, 0
          %s298 = smul.addr %s297, 2
          %s299 = smul.addr %s295, 6
          %s300 = sadd.s32 %s298, %s299
          %s301 = smul.addr %s300, 8
          %s302 = scalar_lea.vmem %s3, %s301
        $region52: #{tpu_custom_call.1} parent=47 // pred_fallthru
          _
      $region48: #{tpu_custom_call.1} parent=5 // pred_fallthru
        _
    $region6: #{tpu_custom_call.1} parent=1 // loop_footer
      %s15 = sadd.s32 1, %s11
    $region7: #{tpu_custom_call.1} parent=1 // loop_footer_branch
      %10 = sbr.rel target = $region3
    $region8: #{tpu_custom_call.1} parent=1 // loop_exit
      _
    %303 = vsyncpa [#allocation3], 1
    %s304 = scalar_lea.sflag [#allocation3], 1
    %305 = vsyncpa %s304, 1
    %306 = vsyncpa [#allocation5], 1

</llo_original>
